<compile_context>
chip_gen: v7x
topology: tpu7x:2x2x1
jax: 0.10.0
libtpu: 0.0.40
codegen_flags: <defaults>
</compile_context>

<pallas_src>
import functools

import jax
import jax.numpy as jnp
from jax.experimental import pallas as pl
from jax.experimental.pallas import tpu as pltpu


_OUT_W = 128      # lane-dense output width (y | z | h | zero-pad)
_BN_EPS = 1e-5


# ----------------------------------------------------------------------------
# Fused Pallas kernel
# ----------------------------------------------------------------------------

def _siamese_fused_kernel(x_ref, we_ref, w1p_ref, w2p_ref, w1q_ref, w2q_ref,
                          vec_ref, out_ref, *,
                          B_real, D_enc, H_p, H_q, D_out, use_predictor):
    B_pad = out_ref.shape[0]

    # mask of real (non-padded) batch rows, used so BN statistics match the
    # unpadded batch (training-mode BatchNorm1d over B_real rows).
    row = jax.lax.broadcasted_iota(jnp.int32, (B_pad, 1), 0)
    mask = (row < B_real).astype(jnp.float32)          # (B_pad, 1)
    inv_b = 1.0 / float(B_real)

    # packed small params: rows = [gamma_p, beta_p, b2_p, gamma_q, beta_q, b2_q, 0, 0]
    vec = vec_ref[...]                                  # (8, 128) f32
    gamma_p = vec[0:1, :H_p]
    beta_p = vec[1:2, :H_p]
    b2_p = vec[2:3, :D_out]
    gamma_q = vec[3:4, :H_q]
    beta_q = vec[4:5, :H_q]
    b2_q = vec[5:6, :D_out]

    # --- encoder stand-in: global average pool over spatial (lane axis) + linear
    pooled = jnp.mean(x_ref[...], axis=-1)              # (B_pad, C) f32
    y = jnp.dot(pooled.astype(jnp.bfloat16), we_ref[...],
                preferred_element_type=jnp.float32)      # (B_pad, D_enc) f32

    def mlp(x, w1, gamma, beta, w2, b2):
        # Linear(bias=False) -> BatchNorm1d(train mode) -> ReLU -> Linear(bias=True)
        h1 = jnp.dot(x.astype(jnp.bfloat16), w1,
                     preferred_element_type=jnp.float32)           # (B_pad, H)
        mean = jnp.sum(h1 * mask, axis=0, keepdims=True) * inv_b   # (1, H)
        diff = (h1 - mean) * mask
        var = jnp.sum(diff * diff, axis=0, keepdims=True) * inv_b  # biased var
        hn = (h1 - mean) * jax.lax.rsqrt(var + _BN_EPS)
        hn = hn * gamma + beta
        hn = jnp.maximum(hn, 0.0)                                   # ReLU (f32)
        return (jnp.dot(hn.astype(jnp.bfloat16), w2,
                        preferred_element_type=jnp.float32) + b2)   # (B_pad, D_out)

    z = mlp(y, w1p_ref[...], gamma_p, beta_p, w2p_ref[...], b2_p)
    if use_predictor:
        h = mlp(z, w1q_ref[...], gamma_q, beta_q, w2q_ref[...], b2_q)
    else:
        h = jnp.zeros((B_pad, D_out), jnp.float32)

    # lane-dense single store: [ y | z | h | zeros ] -> (B_pad, 128)
    pad = jnp.zeros((B_pad, _OUT_W - (D_enc + 2 * D_out)), jnp.float32)
    out_ref[...] = jnp.concatenate([y, z, h, pad], axis=-1)


# ----------------------------------------------------------------------------
# pallas_call wrapper (single block: everything resident in VMEM)
# ----------------------------------------------------------------------------

def _full_spec(shape):
    return pl.BlockSpec(shape, lambda: tuple(0 for _ in shape))


def siamese_arm_forward(x_nchw, params, use_predictor=True):
    B, C, H, W = x_nchw.shape
    B_pad = ((B + 7) // 8) * 8                     # sublane-align the batch

    # NCHW -> (B, C, H*W): a free reshape (no transpose); pad batch with zeros.
    x = x_nchw.reshape(B, C, H * W)
    if B_pad != B:
        x = jnp.pad(x, ((0, B_pad - B), (0, 0), (0, 0)))

    we = params["encoder_w"]                       # (C, D_enc) bf16
    pj = params["projector"]
    pq = params["predictor"]
    D_enc = we.shape[1]
    H_p = pj["w1"].shape[1]
    H_q = pq["w1"].shape[1]
    D_out = pj["w2"].shape[1]
    assert D_enc + 2 * D_out <= _OUT_W
    assert max(H_p, H_q, D_out) <= _OUT_W

    # Pack the six small vectors into one aligned (8, 128) f32 buffer.
    def _row(v):
        v = v.reshape(1, -1).astype(jnp.float32)
        return jnp.pad(v, ((0, 0), (0, _OUT_W - v.shape[1])))
    vec = jnp.concatenate(
        [_row(pj["gamma"]), _row(pj["beta"]), _row(pj["b2"]),
         _row(pq["gamma"]), _row(pq["beta"]), _row(pq["b2"]),
         jnp.zeros((2, _OUT_W), jnp.float32)], axis=0)          # (8, 128)

    kernel = functools.partial(
        _siamese_fused_kernel,
        B_real=B, D_enc=D_enc, H_p=H_p, H_q=H_q, D_out=D_out,
        use_predictor=use_predictor)

    flops = (2 * B_pad * (C * D_enc + D_enc * H_p + H_p * D_out
                          + D_out * H_q + H_q * D_out)
             + B_pad * C * H * W)                                # + pooling adds
    bytes_accessed = (x.size * 4 + we.size * 2
                      + (pj["w1"].size + pj["w2"].size
                         + pq["w1"].size + pq["w2"].size) * 2
                      + vec.size * 4 + B_pad * _OUT_W * 4)

    out = pl.pallas_call(
        kernel,
        out_shape=jax.ShapeDtypeStruct((B_pad, _OUT_W), jnp.float32),
        grid=(),
        in_specs=[
            _full_spec(x.shape),
            _full_spec(we.shape),
            _full_spec(pj["w1"].shape),
            _full_spec(pj["w2"].shape),
            _full_spec(pq["w1"].shape),
            _full_spec(pq["w2"].shape),
            _full_spec(vec.shape),
        ],
        out_specs=_full_spec((B_pad, _OUT_W)),
        cost_estimate=pl.CostEstimate(flops=flops,
                                      transcendentals=H_p + H_q,
                                      bytes_accessed=bytes_accessed),
        compiler_params=pltpu.CompilerParams(vmem_limit_bytes=16 * 1024 * 1024),
    )(x, we, pj["w1"], pj["w2"], pq["w1"], pq["w2"], vec)

    y = out[:B, :D_enc]
    z = out[:B, D_enc:D_enc + D_out]
    h = out[:B, D_enc + D_out:D_enc + 2 * D_out] if use_predictor else None
    return y, z, h


# ----------------------------------------------------------------------------
# Parameter construction (deterministic)
# ----------------------------------------------------------------------------

def make_mlp_params(key, input_dim, hidden_size, output_dim):
    k1, k2, k3 = jax.random.split(key, 3)
    w1 = (jax.random.normal(k1, (input_dim, hidden_size), jnp.float32)
          / jnp.sqrt(input_dim)).astype(jnp.bfloat16)            # MXU weights in bf16
    gamma = jnp.ones((hidden_size,), jnp.float32)                # BN weight init = 1
    beta = jnp.zeros((hidden_size,), jnp.float32)                # BN bias init = 0
    w2 = (jax.random.normal(k2, (hidden_size, output_dim), jnp.float32)
          / jnp.sqrt(hidden_size)).astype(jnp.bfloat16)
    b2 = (jax.random.normal(k3, (output_dim,), jnp.float32)
          / jnp.sqrt(hidden_size))                               # deterministic stand-in bias
    return {"w1": w1, "gamma": gamma, "beta": beta, "w2": w2, "b2": b2}


def make_siamese_params(key, in_channels, encoder_out_dim,
                        projector_hidden, projector_out, predictor_hidden):
    ke, kp, kq = jax.random.split(key, 3)
    we = (jax.random.normal(ke, (in_channels, encoder_out_dim), jnp.float32)
          / jnp.sqrt(in_channels)).astype(jnp.bfloat16)
    projector = make_mlp_params(kp, encoder_out_dim, projector_hidden, projector_out)
    predictor = make_mlp_params(kq, projector_out, predictor_hidden, projector_out)
    return {"encoder_w": we, "projector": projector, "predictor": predictor}


if __name__ == "__main__":
    key = jax.random.PRNGKey(0)
    k_x, k_p = jax.random.split(key)

    # small shapes consistent with the module's forward
    B, C, H, W = 2, 4, 16, 16
    encoder_out_dim = 32
    projector_hidden = 64
    projector_out = 16
    predictor_hidden = 64   # predictor_hidden_size defaults to projector_hidden_size

    x = jax.random.normal(k_x, (B, C, H, W), jnp.float32)
    params = make_siamese_params(
        k_p, C, encoder_out_dim, projector_hidden, projector_out, predictor_hidden
    )

    y, z, h = siamese_arm_forward(x, params, use_predictor=True)
    jax.block_until_ready((y, z, h))

    assert y.shape == (B, encoder_out_dim)
    assert z.shape == (B, projector_out)
    assert h.shape == (B, projector_out)
    assert bool(jnp.all(jnp.isfinite(y))) and bool(jnp.all(jnp.isfinite(z))) \
        and bool(jnp.all(jnp.isfinite(h)))
    print("KERNEL_OK")
</pallas_src>

<mosaic_0001>
module attributes {stable_mosaic.version = 11 : i64} {
  func.func @_siamese_fused_kernel(%arg0: memref<8x4x256xf32, #tpu.memory_space<vmem>>, %arg1: memref<4x32xbf16, #tpu.memory_space<vmem>>, %arg2: memref<32x64xbf16, #tpu.memory_space<vmem>>, %arg3: memref<64x16xbf16, #tpu.memory_space<vmem>>, %arg4: memref<16x64xbf16, #tpu.memory_space<vmem>>, %arg5: memref<64x16xbf16, #tpu.memory_space<vmem>>, %arg6: memref<8x128xf32, #tpu.memory_space<vmem>>, %arg7: memref<8x128xf32, #tpu.memory_space<vmem>>) attributes {dimension_semantics = [], scalar_prefetch = 0 : i64, scratch_operands = 0 : i64, tpu.core_type = #tpu.core_type<tc>} {
    %0 = tpu.iota {dimensions = array<i32: 0>} : vector<8x1xi32>
    %c2_i32 = arith.constant 2 : i32
    %1 = vector.broadcast %c2_i32 : i32 to vector<8x1xi32>
    %2 = arith.cmpi slt, %0, %1 : vector<8x1xi32>
    %3 = arith.extui %2 : vector<8x1xi1> to vector<8x1xi32>
    %4 = arith.sitofp %3 : vector<8x1xi32> to vector<8x1xf32>
    %c0 = arith.constant 0 : index
    %c0_0 = arith.constant 0 : index
    %5 = vector.load %arg6[%c0, %c0_0] : memref<8x128xf32, #tpu.memory_space<vmem>>, vector<8x128xf32>
    %6 = vector.extract_strided_slice %5 {offsets = [0, 0], sizes = [1, 64], strides = [1, 1]} : vector<8x128xf32> to vector<1x64xf32>
    %7 = vector.extract_strided_slice %5 {offsets = [1, 0], sizes = [1, 64], strides = [1, 1]} : vector<8x128xf32> to vector<1x64xf32>
    %8 = vector.extract_strided_slice %5 {offsets = [2, 0], sizes = [1, 16], strides = [1, 1]} : vector<8x128xf32> to vector<1x16xf32>
    %9 = vector.extract_strided_slice %5 {offsets = [3, 0], sizes = [1, 64], strides = [1, 1]} : vector<8x128xf32> to vector<1x64xf32>
    %10 = vector.extract_strided_slice %5 {offsets = [4, 0], sizes = [1, 64], strides = [1, 1]} : vector<8x128xf32> to vector<1x64xf32>
    %11 = vector.extract_strided_slice %5 {offsets = [5, 0], sizes = [1, 16], strides = [1, 1]} : vector<8x128xf32> to vector<1x16xf32>
    %c0_1 = arith.constant 0 : index
    %c0_2 = arith.constant 0 : index
    %c0_3 = arith.constant 0 : index
    %12 = vector.load %arg0[%c0_1, %c0_2, %c0_3] : memref<8x4x256xf32, #tpu.memory_space<vmem>>, vector<8x4x256xf32>
    %cst = arith.constant dense<0.000000e+00> : vector<8x4xf32>
    %13 = vector.multi_reduction <add>, %12, %cst [2] : vector<8x4x256xf32> to vector<8x4xf32>
    %cst_4 = arith.constant 2.560000e+02 : f32
    %14 = vector.broadcast %cst_4 : f32 to vector<8x4xf32>
    %15 = arith.divf %13, %14 : vector<8x4xf32>
    %16 = arith.truncf %15 : vector<8x4xf32> to vector<8x4xbf16>
    %c0_5 = arith.constant 0 : index
    %c0_6 = arith.constant 0 : index
    %17 = vector.load %arg1[%c0_5, %c0_6] : memref<4x32xbf16, #tpu.memory_space<vmem>>, vector<4x32xbf16>
    %cst_7 = arith.constant dense<0.000000e+00> : vector<8x32xf32>
    %18 = tpu.matmul %16, %17, %cst_7 {dimension_numbers = #tpu.dot_dimension_numbers<[1], [0], [0], [1], [0, 0, 1, 1], [], []>} : vector<8x4xbf16>, vector<4x32xbf16>, vector<8x32xf32> -> vector<8x32xf32>
    %c0_8 = arith.constant 0 : index
    %c0_9 = arith.constant 0 : index
    %19 = vector.load %arg2[%c0_8, %c0_9] : memref<32x64xbf16, #tpu.memory_space<vmem>>, vector<32x64xbf16>
    %c0_10 = arith.constant 0 : index
    %c0_11 = arith.constant 0 : index
    %20 = vector.load %arg3[%c0_10, %c0_11] : memref<64x16xbf16, #tpu.memory_space<vmem>>, vector<64x16xbf16>
    %21 = arith.truncf %18 : vector<8x32xf32> to vector<8x32xbf16>
    %cst_12 = arith.constant dense<0.000000e+00> : vector<8x64xf32>
    %22 = tpu.matmul %21, %19, %cst_12 {dimension_numbers = #tpu.dot_dimension_numbers<[1], [0], [0], [1], [0, 0, 1, 1], [], []>} : vector<8x32xbf16>, vector<32x64xbf16>, vector<8x64xf32> -> vector<8x64xf32>
    %23 = vector.broadcast %4 : vector<8x1xf32> to vector<8x64xf32>
    %24 = arith.mulf %22, %23 : vector<8x64xf32>
    %cst_13 = arith.constant dense<0.000000e+00> : vector<64xf32>
    %25 = vector.multi_reduction <add>, %24, %cst_13 [0] : vector<8x64xf32> to vector<64xf32>
    %26 = vector.shape_cast %25 : vector<64xf32> to vector<1x64xf32>
    %cst_14 = arith.constant 5.000000e-01 : f32
    %27 = vector.broadcast %cst_14 : f32 to vector<1x64xf32>
    %28 = arith.mulf %26, %27 : vector<1x64xf32>
    %29 = vector.broadcast %28 : vector<1x64xf32> to vector<8x64xf32>
    %30 = arith.subf %22, %29 : vector<8x64xf32>
    %31 = vector.broadcast %4 : vector<8x1xf32> to vector<8x64xf32>
    %32 = arith.mulf %30, %31 : vector<8x64xf32>
    %33 = arith.mulf %32, %32 : vector<8x64xf32>
    %cst_15 = arith.constant dense<0.000000e+00> : vector<64xf32>
    %34 = vector.multi_reduction <add>, %33, %cst_15 [0] : vector<8x64xf32> to vector<64xf32>
    %35 = vector.shape_cast %34 : vector<64xf32> to vector<1x64xf32>
    %cst_16 = arith.constant 5.000000e-01 : f32
    %36 = vector.broadcast %cst_16 : f32 to vector<1x64xf32>
    %37 = arith.mulf %35, %36 : vector<1x64xf32>
    %38 = vector.broadcast %28 : vector<1x64xf32> to vector<8x64xf32>
    %39 = arith.subf %22, %38 : vector<8x64xf32>
    %cst_17 = arith.constant 9.99999974E-6 : f32
    %40 = vector.broadcast %cst_17 : f32 to vector<1x64xf32>
    %41 = arith.addf %37, %40 : vector<1x64xf32>
    %42 = math.rsqrt %41 : vector<1x64xf32>
    %43 = vector.broadcast %42 : vector<1x64xf32> to vector<8x64xf32>
    %44 = arith.mulf %39, %43 : vector<8x64xf32>
    %45 = vector.broadcast %6 : vector<1x64xf32> to vector<8x64xf32>
    %46 = arith.mulf %44, %45 : vector<8x64xf32>
    %47 = vector.broadcast %7 : vector<1x64xf32> to vector<8x64xf32>
    %48 = arith.addf %46, %47 : vector<8x64xf32>
    %cst_18 = arith.constant 0.000000e+00 : f32
    %49 = vector.broadcast %cst_18 : f32 to vector<8x64xf32>
    %50 = arith.maximumf %48, %49 : vector<8x64xf32>
    %51 = arith.truncf %50 : vector<8x64xf32> to vector<8x64xbf16>
    %cst_19 = arith.constant dense<0.000000e+00> : vector<8x16xf32>
    %52 = tpu.matmul %51, %20, %cst_19 {dimension_numbers = #tpu.dot_dimension_numbers<[1], [0], [0], [1], [0, 0, 1, 1], [], []>} : vector<8x64xbf16>, vector<64x16xbf16>, vector<8x16xf32> -> vector<8x16xf32>
    %53 = vector.broadcast %8 : vector<1x16xf32> to vector<8x16xf32>
    %54 = arith.addf %52, %53 : vector<8x16xf32>
    %c0_20 = arith.constant 0 : index
    %c0_21 = arith.constant 0 : index
    %55 = vector.load %arg4[%c0_20, %c0_21] : memref<16x64xbf16, #tpu.memory_space<vmem>>, vector<16x64xbf16>
    %c0_22 = arith.constant 0 : index
    %c0_23 = arith.constant 0 : index
    %56 = vector.load %arg5[%c0_22, %c0_23] : memref<64x16xbf16, #tpu.memory_space<vmem>>, vector<64x16xbf16>
    %57 = arith.truncf %54 : vector<8x16xf32> to vector<8x16xbf16>
    %cst_24 = arith.constant dense<0.000000e+00> : vector<8x64xf32>
    %58 = tpu.matmul %57, %55, %cst_24 {dimension_numbers = #tpu.dot_dimension_numbers<[1], [0], [0], [1], [0, 0, 1, 1], [], []>} : vector<8x16xbf16>, vector<16x64xbf16>, vector<8x64xf32> -> vector<8x64xf32>
    %59 = vector.broadcast %4 : vector<8x1xf32> to vector<8x64xf32>
    %60 = arith.mulf %58, %59 : vector<8x64xf32>
    %cst_25 = arith.constant dense<0.000000e+00> : vector<64xf32>
    %61 = vector.multi_reduction <add>, %60, %cst_25 [0] : vector<8x64xf32> to vector<64xf32>
    %62 = vector.shape_cast %61 : vector<64xf32> to vector<1x64xf32>
    %cst_26 = arith.constant 5.000000e-01 : f32
    %63 = vector.broadcast %cst_26 : f32 to vector<1x64xf32>
    %64 = arith.mulf %62, %63 : vector<1x64xf32>
    %65 = vector.broadcast %64 : vector<1x64xf32> to vector<8x64xf32>
    %66 = arith.subf %58, %65 : vector<8x64xf32>
    %67 = vector.broadcast %4 : vector<8x1xf32> to vector<8x64xf32>
    %68 = arith.mulf %66, %67 : vector<8x64xf32>
    %69 = arith.mulf %68, %68 : vector<8x64xf32>
    %cst_27 = arith.constant dense<0.000000e+00> : vector<64xf32>
    %70 = vector.multi_reduction <add>, %69, %cst_27 [0] : vector<8x64xf32> to vector<64xf32>
    %71 = vector.shape_cast %70 : vector<64xf32> to vector<1x64xf32>
    %cst_28 = arith.constant 5.000000e-01 : f32
    %72 = vector.broadcast %cst_28 : f32 to vector<1x64xf32>
    %73 = arith.mulf %71, %72 : vector<1x64xf32>
    %74 = vector.broadcast %64 : vector<1x64xf32> to vector<8x64xf32>
    %75 = arith.subf %58, %74 : vector<8x64xf32>
    %cst_29 = arith.constant 9.99999974E-6 : f32
    %76 = vector.broadcast %cst_29 : f32 to vector<1x64xf32>
    %77 = arith.addf %73, %76 : vector<1x64xf32>
    %78 = math.rsqrt %77 : vector<1x64xf32>
    %79 = vector.broadcast %78 : vector<1x64xf32> to vector<8x64xf32>
    %80 = arith.mulf %75, %79 : vector<8x64xf32>
    %81 = vector.broadcast %9 : vector<1x64xf32> to vector<8x64xf32>
    %82 = arith.mulf %80, %81 : vector<8x64xf32>
    %83 = vector.broadcast %10 : vector<1x64xf32> to vector<8x64xf32>
    %84 = arith.addf %82, %83 : vector<8x64xf32>
    %cst_30 = arith.constant 0.000000e+00 : f32
    %85 = vector.broadcast %cst_30 : f32 to vector<8x64xf32>
    %86 = arith.maximumf %84, %85 : vector<8x64xf32>
    %87 = arith.truncf %86 : vector<8x64xf32> to vector<8x64xbf16>
    %cst_31 = arith.constant dense<0.000000e+00> : vector<8x16xf32>
    %88 = tpu.matmul %87, %56, %cst_31 {dimension_numbers = #tpu.dot_dimension_numbers<[1], [0], [0], [1], [0, 0, 1, 1], [], []>} : vector<8x64xbf16>, vector<64x16xbf16>, vector<8x16xf32> -> vector<8x16xf32>
    %89 = vector.broadcast %11 : vector<1x16xf32> to vector<8x16xf32>
    %90 = arith.addf %88, %89 : vector<8x16xf32>
    %cst_32 = arith.constant 0.000000e+00 : f32
    %91 = vector.broadcast %cst_32 : f32 to vector<8x64xf32>
    %92 = tpu.concatenate %18, %54, %90, %91 in 1 : vector<8x32xf32>, vector<8x16xf32>, vector<8x16xf32>, vector<8x64xf32> -> vector<8x128xf32>
    %c0_33 = arith.constant 0 : index
    %c0_34 = arith.constant 0 : index
    %93 = vector.load %arg7[%c0_33, %c0_34] : memref<8x128xf32, #tpu.memory_space<vmem>>, vector<8x128xf32>
    tpu.vector_store %arg7[%c0_33, %c0_34], %92 {strides = array<i32>} : memref<8x128xf32, #tpu.memory_space<vmem>>, vector<8x128xf32>,
    return
  }
}

</mosaic_0001>

<llo_original>
// kernel: tpu_custom_call.1
$region0: #{tpu_custom_call.1}
  #allocation0 [shape = 'u32[]', space=smem, size = 0x4, offset = 0x4, fixed_abs, tag = 'smem constant byte address 0x4 - core index']
  #allocation1 [shape = 'u32[144,128]{1,0:T(1,128)}', space=vmem, size = 0x12000, scoped, tag = 'internal scratch']
  %s0 = inlined_call_operand.vmem [shape: f32[8,4,256], index: 0, kind: input, shape index: {}]
  %s1 = inlined_call_operand.vmem [shape: bf16[4,32], index: 1, kind: input, shape index: {}]
  %s2 = inlined_call_operand.vmem [shape: bf16[32,64], index: 2, kind: input, shape index: {}]
  %s3 = inlined_call_operand.vmem [shape: bf16[64,16], index: 3, kind: input, shape index: {}]
  %s4 = inlined_call_operand.hbm [shape: bf16[16,64], index: 4, kind: input, shape index: {}]
  %s5 = inlined_call_operand.vmem [shape: bf16[64,16], index: 5, kind: input, shape index: {}]
  %s6 = inlined_call_operand.hbm [shape: f32[8,128], index: 6, kind: input, shape index: {}]
  %s7 = inlined_call_operand.hbm [shape: f32[8,128], index: 7, kind: output, shape index: {}]
  %s8 = sld [smem:[#allocation0]]
  $region46: #{tpu_custom_call.1} parent=0
    _
  %s10 = ssub.s32 1, %s8
  %s11 = scalar_select 0, %s10, %s8
  $region1: #{tpu_custom_call.1} parent=0
    #allocation2 [shape = 'u8[4096]{0}', space=vmem, size = 0x1000, scoped, tag = 'input window, operand 4, single buffered']
    #allocation3 [shape = 's32[1]{0}', space=sflag, size = 0x4, scoped, tag = 'scoped memory for tpu_custom_call.1']
    #allocation4 [shape = 's32[1]{0}', space=sflag, size = 0x4, scoped, tag = 'scoped memory for tpu_custom_call.1']
    #allocation5 [shape = 'u8[4096]{0}', space=vmem, size = 0x1000, scoped, tag = 'input window, operand 6, single buffered']
    #allocation6 [shape = 's32[1]{0}', space=sflag, size = 0x4, scoped, tag = 'scoped memory for tpu_custom_call.1']
    #allocation7 [shape = 'u8[4096]{0}', space=vmem, size = 0x1000, scoped, tag = 'output window, operand 0, single buffered']
    %12 = vsyncpa [#allocation3], 0
    %13 = vsyncpa [#allocation6], 0
    %14 = vsyncpa [#allocation4], 0
    // Predicated region
    $region2: #{tpu_custom_call.1} parent=1 // pred_check
      _
    $region3: #{tpu_custom_call.1} parent=1 // pred_check_branch
      %16 = sbr.rel (0) target = $region5
    $region4: #{tpu_custom_call.1} parent=1 // pred_region
      _
    $region5: #{tpu_custom_call.1} parent=1 // pred_fallthru
      _
    // Predicated region
    $region6: #{tpu_custom_call.1} parent=1 // pred_check
      _
    $region7: #{tpu_custom_call.1} parent=1 // pred_check_branch
      %18 = sbr.rel (0) target = $region9
    $region8: #{tpu_custom_call.1} parent=1 // pred_region
      _
    $region9: #{tpu_custom_call.1} parent=1 // pred_fallthru
      _
    // Predicated region
    $region10: #{tpu_custom_call.1} parent=1 // pred_check
      _
    $region11: #{tpu_custom_call.1} parent=1 // pred_check_branch
      %20 = sbr.rel (0) target = $region13
    $region12: #{tpu_custom_call.1} parent=1 // pred_region
      _
    $region13: #{tpu_custom_call.1} parent=1 // pred_fallthru
      _
    // Predicated region
    $region14: #{tpu_custom_call.1} parent=1 // pred_check
      _
    $region15: #{tpu_custom_call.1} parent=1 // pred_check_branch
      %22 = sbr.rel (0) target = $region17
    $region16: #{tpu_custom_call.1} parent=1 // pred_region
      _
    $region17: #{tpu_custom_call.1} parent=1 // pred_fallthru
      _
    // Predicated region
    $region18: #{tpu_custom_call.1} parent=1 // pred_check
      _
    $region19: #{tpu_custom_call.1} parent=1 // pred_check_branch
      %24 = sbr.rel (0) target = $region21
    $region20: #{tpu_custom_call.1} parent=1 // pred_region
      %s26 = ssub.s32 128, 128
      %27 = vsyncadd [#allocation3], %s26
      %s28 = sshll.u32 [#allocation2], 4
      %s29 = int_to_ptr.vmem [resolvable:$true] %s28
      %34 = dma.hbm_to_vmem [thread:$0]  %s4, 128, %s29, [#allocation3], 64, 64, 4
    $region21: #{tpu_custom_call.1} parent=1 // pred_fallthru
      _
    // Predicated region
    $region22: #{tpu_custom_call.1} parent=1 // pred_check
      _
    $region23: #{tpu_custom_call.1} parent=1 // pred_check_branch
      %36 = sbr.rel (0) target = $region25
    $region24: #{tpu_custom_call.1} parent=1 // pred_region
      _
    $region25: #{tpu_custom_call.1} parent=1 // pred_fallthru
      _
    // Predicated region
    $region26: #{tpu_custom_call.1} parent=1 // pred_check
      _
    $region27: #{tpu_custom_call.1} parent=1 // pred_check_branch
      %38 = sbr.rel (0) target = $region29
    $region28: #{tpu_custom_call.1} parent=1 // pred_region
      %s40 = ssub.s32 128, 128
      %41 = vsyncadd [#allocation6], %s40
      %s43 = sshll.u32 [#allocation5], 4
      %s44 = int_to_ptr.vmem [resolvable:$true] %s43
      %46 = dma.hbm_to_vmem [thread:$0]  %s6, 128, %s44, [#allocation6]
    $region29: #{tpu_custom_call.1} parent=1 // pred_fallthru
      _
    // Predicated region
    $region30: #{tpu_custom_call.1} parent=1 // pred_check
      _
    $region31: #{tpu_custom_call.1} parent=1 // pred_check_branch
      %48 = sbr.rel (0) target = $region33
    $region32: #{tpu_custom_call.1} parent=1 // pred_region
      %49 = dma.done [#allocation3], 128
    $region33: #{tpu_custom_call.1} parent=1 // pred_fallthru
      _
    // Predicated region
    $region34: #{tpu_custom_call.1} parent=1 // pred_check
      _
    $region35: #{tpu_custom_call.1} parent=1 // pred_check_branch
      %51 = sbr.rel (0) target = $region37
    $region36: #{tpu_custom_call.1} parent=1 // pred_region
      %52 = dma.done [#allocation6], 128
    $region37: #{tpu_custom_call.1} parent=1 // pred_fallthru
      _
    %v54 = vlaneseq
    %v55 = vshrl.u32 %v54, 7
    %vm56 = vcmp.lt.s32.totalorder %v55, 2
    %v57 = vsel %vm56, 1, 0
    %v58 = vcvt.s32.f32 %v57
    %v59 = vld [vmem:[#allocation5] sm:$0xff]
    %v60 = vld [vmem:[%s0] sm:$0xff]
    %v61 = vld [vmem:[%s0 + $0x8] sm:$0xff]
    %v62 = vld [vmem:[%s0 + $0x10] sm:$0xff]
    %v63 = vld [vmem:[%s0 + $0x18] sm:$0xff]
    %v64 = vld [vmem:[%s0 + $0x20] sm:$0xff]
    %v65 = vld [vmem:[%s0 + $0x28] sm:$0xff]
    %v66 = vld [vmem:[%s0 + $0x30] sm:$0xff]
    %v67 = vld [vmem:[%s0 + $0x38] sm:$0xff]
    %v76 = vcombine.high %v60, %v60
    %v77 = vcombine.high %v61, %v61
    %v78 = vcombine.high %v62, %v62
    %v79 = vcombine.high %v63, %v63
    %v80 = vcombine.high %v64, %v64
    %v81 = vcombine.high %v65, %v65
    %v82 = vcombine.high %v66, %v66
    %v83 = vcombine.high %v67, %v67
    %vm92 = vcmask 1043456
    %v93 = vsel %vm92, %v60, 0.0
    %v94 = vsel %vm92, %v76, 0.0
    %v95 = vadd.f32 %v93, %v94
    %96 = vadd.xlane.f32.xlu0 %v95
    %v97 = vpop.xlane.xlu0 %96
    %v98 = vsel %vm92, %v61, 0.0
    %v99 = vsel %vm92, %v77, 0.0
    %v100 = vadd.f32 %v98, %v99
    %101 = vadd.xlane.f32.xlu0 %v100
    %v102 = vpop.xlane.xlu0 %101
    %v103 = vsel %vm92, %v62, 0.0
    %v104 = vsel %vm92, %v78, 0.0
    %v105 = vadd.f32 %v103, %v104
    %106 = vadd.xlane.f32.xlu0 %v105
    %v107 = vpop.xlane.xlu0 %106
    %v108 = vsel %vm92, %v63, 0.0
    %v109 = vsel %vm92, %v79, 0.0
    %v110 = vadd.f32 %v108, %v109
    %111 = vadd.xlane.f32.xlu0 %v110
    %v112 = vpop.xlane.xlu0 %111
    %v113 = vsel %vm92, %v64, 0.0
    %v114 = vsel %vm92, %v80, 0.0
    %v115 = vadd.f32 %v113, %v114
    %116 = vadd.xlane.f32.xlu0 %v115
    %v117 = vpop.xlane.xlu0 %116
    %v118 = vsel %vm92, %v65, 0.0
    %v119 = vsel %vm92, %v81, 0.0
    %v120 = vadd.f32 %v118, %v119
    %121 = vadd.xlane.f32.xlu0 %v120
    %v122 = vpop.xlane.xlu0 %121
    %v123 = vsel %vm92, %v66, 0.0
    %v124 = vsel %vm92, %v82, 0.0
    %v125 = vadd.f32 %v123, %v124
    %126 = vadd.xlane.f32.xlu0 %v125
    %v127 = vpop.xlane.xlu0 %126
    %v128 = vsel %vm92, %v67, 0.0
    %v129 = vsel %vm92, %v83, 0.0
    %v130 = vadd.f32 %v128, %v129
    %131 = vadd.xlane.f32.xlu0 %v130
    %v132 = vpop.xlane.xlu0 %131
    %v133 = vrcp.pop 256.0
    %v134 = vmul.f32 %v97, %v133
    %v135 = vmul.f32 %v102, %v133
    %v136 = vmul.f32 %v107, %v133
    %v137 = vmul.f32 %v112, %v133
    %v138 = vmul.f32 %v117, %v133
    %v139 = vmul.f32 %v122, %v133
    %v140 = vmul.f32 %v127, %v133
    %v141 = vmul.f32 %v132, %v133
    %v142 = vpack.c.bf16 %v134, %v134
    %v143 = vpack.c.bf16 %v135, %v135
    %v144 = vpack.c.bf16 %v136, %v136
    %v145 = vpack.c.bf16 %v137, %v137
    %v146 = vpack.c.bf16 %v138, %v138
    %v147 = vpack.c.bf16 %v139, %v139
    %v148 = vpack.c.bf16 %v140, %v140
    %v149 = vpack.c.bf16 %v141, %v141
    %v150 = vld [vmem:[%s1] sm:$0x3]
    %v159 = vunpack.c.l.b16 %v142
    %v160 = vunpack.c.l.b16 %v143
    %v161 = vunpack.c.l.b16 %v144
    %v162 = vunpack.c.l.b16 %v145
    %v163 = vunpack.c.l.b16 %v146
    %v164 = vunpack.c.l.b16 %v147
    %v165 = vunpack.c.l.b16 %v148
    %v166 = vunpack.c.l.b16 %v149
    %v167 = vlaneseq
    %v168 = vand.u32 %v167, 127
    %v169 = vlaneseq
    %v170 = vshrl.u32 %v169, 7
    %v171 = vsub.s32 %v168, %v170
    %v172 = vrot.slane %v159, %v171
    %v173 = vlaneseq
    %v174 = vshrl.u32 %v173, 7
    %v175 = vsub.s32 %v168, %v174
    %v176 = vrot.slane %v160, %v175
    %v177 = vlaneseq
    %v178 = vshrl.u32 %v177, 7
    %v179 = vsub.s32 %v168, %v178
    %v180 = vrot.slane %v161, %v179
    %v181 = vlaneseq
    %v182 = vshrl.u32 %v181, 7
    %v183 = vsub.s32 %v168, %v182
    %v184 = vrot.slane %v162, %v183
    %v185 = vlaneseq
    %v186 = vshrl.u32 %v185, 7
    %v187 = vsub.s32 %v168, %v186
    %v188 = vrot.slane %v163, %v187
    %v189 = vlaneseq
    %v190 = vshrl.u32 %v189, 7
    %v191 = vsub.s32 %v168, %v190
    %v192 = vrot.slane %v164, %v191
    %v193 = vlaneseq
    %v194 = vshrl.u32 %v193, 7
    %v195 = vsub.s32 %v168, %v194
    %v196 = vrot.slane %v165, %v195
    %v197 = vlaneseq
    %v198 = vshrl.u32 %v197, 7
    %v199 = vsub.s32 %v168, %v198
    %v200 = vrot.slane %v166, %v199
    %vm201 = vcmask 1041409
    %v202 = vsel %vm201, %v176, %v172
    %vm203 = vcmask 1042434
    %v204 = vsel %vm203, %v180, %v202
    %vm205 = vcmask 1043459
    %v206 = vsel %vm205, %v184, %v204
    %vm207 = vcmask 1044484
    %v208 = vsel %vm207, %v188, %v206
    %vm209 = vcmask 1045509
    %v210 = vsel %vm209, %v192, %v208
    %vm211 = vcmask 1046534
    %v212 = vsel %vm211, %v196, %v210
    %vm213 = vcmask 1047559
    %v214 = vsel %vm213, %v200, %v212
    %v215 = vpack.c.b16 %v214, %v214
    %vm216 = vcmask 31744
    %v218 = vsel %vm216, %v215, 0
    %vm220 = vcmask 1041408
    %v222 = vsel %vm220, %v150, 0
    %224 = vmatprep.subr.bf16.mxu0 0
    %225 = vmatpush1.bf16.msra.mxu0 %v222
    %226 = vmatprep.subr.bf16.mxu0 0
    %227 = vmatpush1.bf16.msra.mxu0 0
    %228 = vmatprep.subr.bf16.mxu0 0
    %229 = vmatpush1.bf16.msra.mxu0 0
    %230 = vmatprep.subr.bf16.mxu0 0
    %231 = vmatpush1.bf16.msra.mxu0 0
    %232 = vmatprep.subr.bf16.mxu0 0
    %233 = vmatpush1.bf16.msra.mxu0 0
    %234 = vmatprep.subr.bf16.mxu0 0
    %235 = vmatpush1.bf16.msra.mxu0 0
    %236 = vmatprep.subr.bf16.mxu0 0
    %237 = vmatpush1.bf16.msra.mxu0 0
    %238 = vmatprep.subr.bf16.mxu0 0
    %239 = vmatpush1.bf16.msra.mxu0 0
    %240 = vmatprep.subr.bf16.mxu0 0
    %241 = vmatpush1.bf16.msra.mxu0 0
    %242 = vmatprep.subr.bf16.mxu0 0
    %243 = vmatpush1.bf16.msra.mxu0 0
    %244 = vmatprep.subr.bf16.mxu0 0
    %245 = vmatpush1.bf16.msra.mxu0 0
    %246 = vmatprep.subr.bf16.mxu0 0
    %247 = vmatpush1.bf16.msra.mxu0 0
    %248 = vmatprep.subr.bf16.mxu0 0
    %249 = vmatpush1.bf16.msra.mxu0 0
    %250 = vmatprep.subr.bf16.mxu0 0
    %251 = vmatpush1.bf16.msra.mxu0 0
    %252 = vmatprep.subr.bf16.mxu0 0
    %253 = vmatpush1.bf16.msra.mxu0 0
    %254 = vmatprep.subr.bf16.mxu0 0
    %255 = vmatpush1.bf16.msra.mxu0 0
    %256 = vmatprep.mubr.bf16.mxu0 0
    %257 = vmatmul.mubr.bf16.gmra.mrb[0].mxu0 %v218
    %v258 = vpop.f32.mrb[0].mxu0
    %v259 = vadd.f32 0.0, %v258
    %v260 = vpop.f32.mrb[0].mxu0
    %v261 = vpop.f32.mrb[0].mxu0
    %v262 = vpop.f32.mrb[0].mxu0
    %263 = vdwg.mxu0
    %v264 = vld [vmem:[%s2] sm:$0xf]
    %v265 = vld [vmem:[%s2 + $0x4] sm:$0xf]
    %v266 = vld [vmem:[%s2 + $0x8] sm:$0xf]
    %v267 = vld [vmem:[%s2 + $0xc] sm:$0xf]
    %v268 = vld [vmem:[%s3] sm:$0xf]
    %v269 = vld [vmem:[%s3 + $0x4] sm:$0xf]
    %v270 = vld [vmem:[%s3 + $0x8] sm:$0xf]
    %v271 = vld [vmem:[%s3 + $0xc] sm:$0xf]
    %v272 = vld [vmem:[%s3 + $0x10] sm:$0xf]
    %v273 = vld [vmem:[%s3 + $0x14] sm:$0xf]
    %v274 = vld [vmem:[%s3 + $0x18] sm:$0xf]
    %v275 = vld [vmem:[%s3 + $0x1c] sm:$0xf]
    %v276 = vpack.c.bf16 %v259, %v259
    %v281 = vunpack.c.l.b16 %v264
    %v282 = vunpack.c.l.b16 %v265
    %v283 = vunpack.c.l.b16 %v266
    %v284 = vunpack.c.l.b16 %v267
    %v285 = vpack.c.b16 %v282, %v281
    %v286 = vpack.c.b16 %v284, %v283
    %vm289 = vcmask 261120
    %v291 = vsel %vm289, %v276, 0
    %293 = vmatprep.subr.bf16.mxu0 0
    %294 = vmatpush1.bf16.msra.mxu0 %v285
    %295 = vmatprep.subr.bf16.mxu0 0
    %296 = vmatpush1.bf16.msra.mxu0 %v286
    %297 = vmatprep.subr.bf16.mxu0 0
    %298 = vmatpush1.bf16.msra.mxu0 0
    %299 = vmatprep.subr.bf16.mxu0 0
    %300 = vmatpush1.bf16.msra.mxu0 0
    %301 = vmatprep.subr.bf16.mxu0 0
    %302 = vmatpush1.bf16.msra.mxu0 0
    %303 = vmatprep.subr.bf16.mxu0 0
    %304 = vmatpush1.bf16.msra.mxu0 0
    %305 = vmatprep.subr.bf16.mxu0 0
    %306 = vmatpush1.bf16.msra.mxu0 0
    %307 = vmatprep.subr.bf16.mxu0 0
    %308 = vmatpush1.bf16.msra.mxu0 0
    %309 = vmatprep.subr.bf16.mxu0 0
    %310 = vmatpush1.bf16.msra.mxu0 0
    %311 = vmatprep.subr.bf16.mxu0 0
    %312 = vmatpush1.bf16.msra.mxu0 0
    %313 = vmatprep.subr.bf16.mxu0 0
    %314 = vmatpush1.bf16.msra.mxu0 0
    %315 = vmatprep.subr.bf16.mxu0 0
    %316 = vmatpush1.bf16.msra.mxu0 0
    %317 = vmatprep.subr.bf16.mxu0 0
    %318 = vmatpush1.bf16.msra.mxu0 0
    %319 = vmatprep.subr.bf16.mxu0 0
    %320 = vmatpush1.bf16.msra.mxu0 0
    %321 = vmatprep.subr.bf16.mxu0 0
    %322 = vmatpush1.bf16.msra.mxu0 0
    %323 = vmatprep.subr.bf16.mxu0 0
    %324 = vmatpush1.bf16.msra.mxu0 0
    %325 = vmatprep.mubr.bf16.mxu0 0
    %326 = vmatmul.mubr.bf16.gmra.mrb[0].mxu0 %v291
    %v327 = vpop.f32.mrb[0].mxu0
    %v328 = vadd.f32 0.0, %v327
    %v329 = vpop.f32.mrb[0].mxu0
    %v330 = vpop.f32.mrb[0].mxu0
    %v331 = vpop.f32.mrb[0].mxu0
    %332 = vdwg.mxu0
    %v333 = vmul.f32 %v328, %v58
    %vm334 = vcmask 523264
    %v335 = vsel %vm334, %v333, 0.0
    %v336 = vrot.slane %v335, 4
    %v337 = vadd.f32 %v335, %v336
    %v338 = vrot.slane %v337, 2
    %v339 = vadd.f32 %v337, %v338
    %v340 = vrot.slane %v339, 1
    %v341 = vadd.f32 %v339, %v340
    %v342 = vmul.f32 %v341, 0.5
    %v343 = vsub.f32 %v328, %v342
    %v344 = vmul.f32 %v343, %v58
    %v345 = vmul.f32 %v344, %v344
    %v346 = vsel %vm334, %v345, 0.0
    %v347 = vrot.slane %v346, 4
    %v348 = vadd.f32 %v346, %v347
    %v349 = vrot.slane %v348, 2
    %v350 = vadd.f32 %v348, %v349
    %v351 = vrot.slane %v350, 1
    %v352 = vadd.f32 %v350, %v351
    %v353 = vmul.f32 %v352, 0.5
    %v354 = vadd.f32 %v353, 1e-05
    %v355 = vrsqrt.pop %v354
    %v356 = vmul.f32 %v343, %v355
    %v357 = vlaneseq
    %v358 = vshrl.u32 %v357, 7
    %v359 = vsub.s32 0, %v358
    %v360 = vrot.slane %v59, %v359
    %v361 = vmul.f32 %v356, %v360
    %v362 = vlaneseq
    %v363 = vshrl.u32 %v362, 7
    %v364 = vsub.s32 1, %v363
    %v365 = vrot.slane %v59, %v364
    %v366 = vadd.f32 %v361, %v365
    %v367 = vmax.f32 %v366, 0.0
    %v368 = vpack.c.bf16 %v367, %v367
    %v369 = vlaneseq
    %v370 = vshrl.u32 %v369, 7
    %v371 = vsub.s32 2, %v370
    %v372 = vrot.slane %v59, %v371
    %v381 = vunpack.c.l.b16 %v268
    %v382 = vunpack.c.l.b16 %v269
    %v383 = vunpack.c.l.b16 %v270
    %v384 = vunpack.c.l.b16 %v271
    %v385 = vunpack.c.l.b16 %v272
    %v386 = vunpack.c.l.b16 %v273
    %v387 = vunpack.c.l.b16 %v274
    %v388 = vunpack.c.l.b16 %v275
    %v389 = vpack.c.b16 %v382, %v381
    %v390 = vpack.c.b16 %v384, %v383
    %v391 = vpack.c.b16 %v386, %v385
    %v392 = vpack.c.b16 %v388, %v387
    %v398 = vsel %vm334, %v368, 0
    %400 = vmatprep.subr.bf16.mxu0 0
    %401 = vmatpush1.bf16.msra.mxu0 %v389
    %402 = vmatprep.subr.bf16.mxu0 0
    %403 = vmatpush1.bf16.msra.mxu0 %v390
    %404 = vmatprep.subr.bf16.mxu0 0
    %405 = vmatpush1.bf16.msra.mxu0 %v391
    %406 = vmatprep.subr.bf16.mxu0 0
    %407 = vmatpush1.bf16.msra.mxu0 %v392
    %408 = vmatprep.subr.bf16.mxu0 0
    %409 = vmatpush1.bf16.msra.mxu0 0
    %410 = vmatprep.subr.bf16.mxu0 0
    %411 = vmatpush1.bf16.msra.mxu0 0
    %412 = vmatprep.subr.bf16.mxu0 0
    %413 = vmatpush1.bf16.msra.mxu0 0
    %414 = vmatprep.subr.bf16.mxu0 0
    %415 = vmatpush1.bf16.msra.mxu0 0
    %416 = vmatprep.subr.bf16.mxu0 0
    %417 = vmatpush1.bf16.msra.mxu0 0
    %418 = vmatprep.subr.bf16.mxu0 0
    %419 = vmatpush1.bf16.msra.mxu0 0
    %420 = vmatprep.subr.bf16.mxu0 0
    %421 = vmatpush1.bf16.msra.mxu0 0
    %422 = vmatprep.subr.bf16.mxu0 0
    %423 = vmatpush1.bf16.msra.mxu0 0
    %424 = vmatprep.subr.bf16.mxu0 0
    %425 = vmatpush1.bf16.msra.mxu0 0
    %426 = vmatprep.subr.bf16.mxu0 0
    %427 = vmatpush1.bf16.msra.mxu0 0
    %428 = vmatprep.subr.bf16.mxu0 0
    %429 = vmatpush1.bf16.msra.mxu0 0
    %430 = vmatprep.subr.bf16.mxu0 0
    %431 = vmatpush1.bf16.msra.mxu0 0
    %432 = vmatprep.mubr.bf16.mxu0 0
    %433 = vmatmul.mubr.bf16.gmra.mrb[0].mxu0 %v398
    %v434 = vpop.f32.mrb[0].mxu0
    %v435 = vadd.f32 %v372, %v434
    %v436 = vpop.f32.mrb[0].mxu0
    %v437 = vpop.f32.mrb[0].mxu0
    %v438 = vpop.f32.mrb[0].mxu0
    %439 = vdwg.mxu0
    %v440 = vld [vmem:[#allocation2] sm:$0xf]
    %v441 = vld [vmem:[#allocation2 + $0x4] sm:$0xf]
    %v442 = vld [vmem:[%s5] sm:$0xf]
    %v443 = vld [vmem:[%s5 + $0x4] sm:$0xf]
    %v444 = vld [vmem:[%s5 + $0x8] sm:$0xf]
    %v445 = vld [vmem:[%s5 + $0xc] sm:$0xf]
    %v446 = vld [vmem:[%s5 + $0x10] sm:$0xf]
    %v447 = vld [vmem:[%s5 + $0x14] sm:$0xf]
    %v448 = vld [vmem:[%s5 + $0x18] sm:$0xf]
    %v449 = vld [vmem:[%s5 + $0x1c] sm:$0xf]
    %v450 = vpack.c.bf16 %v435, %v435
    %v453 = vunpack.c.l.b16 %v440
    %v454 = vunpack.c.l.b16 %v441
    %v455 = vpack.c.b16 %v454, %v453
    %vm457 = vcmask 130048
    %v459 = vsel %vm457, %v450, 0
    %461 = vmatprep.subr.bf16.mxu0 0
    %462 = vmatpush1.bf16.msra.mxu0 %v455
    %463 = vmatprep.subr.bf16.mxu0 0
    %464 = vmatpush1.bf16.msra.mxu0 0
    %465 = vmatprep.subr.bf16.mxu0 0
    %466 = vmatpush1.bf16.msra.mxu0 0
    %467 = vmatprep.subr.bf16.mxu0 0
    %468 = vmatpush1.bf16.msra.mxu0 0
    %469 = vmatprep.subr.bf16.mxu0 0
    %470 = vmatpush1.bf16.msra.mxu0 0
    %471 = vmatprep.subr.bf16.mxu0 0
    %472 = vmatpush1.bf16.msra.mxu0 0
    %473 = vmatprep.subr.bf16.mxu0 0
    %474 = vmatpush1.bf16.msra.mxu0 0
    %475 = vmatprep.subr.bf16.mxu0 0
    %476 = vmatpush1.bf16.msra.mxu0 0
    %477 = vmatprep.subr.bf16.mxu0 0
    %478 = vmatpush1.bf16.msra.mxu0 0
    %479 = vmatprep.subr.bf16.mxu0 0
    %480 = vmatpush1.bf16.msra.mxu0 0
    %481 = vmatprep.subr.bf16.mxu0 0
    %482 = vmatpush1.bf16.msra.mxu0 0
    %483 = vmatprep.subr.bf16.mxu0 0
    %484 = vmatpush1.bf16.msra.mxu0 0
    %485 = vmatprep.subr.bf16.mxu0 0
    %486 = vmatpush1.bf16.msra.mxu0 0
    %487 = vmatprep.subr.bf16.mxu0 0
    %488 = vmatpush1.bf16.msra.mxu0 0
    %489 = vmatprep.subr.bf16.mxu0 0
    %490 = vmatpush1.bf16.msra.mxu0 0
    %491 = vmatprep.subr.bf16.mxu0 0
    %492 = vmatpush1.bf16.msra.mxu0 0
    %493 = vmatprep.mubr.bf16.mxu0 0
    %494 = vmatmul.mubr.bf16.gmra.mrb[0].mxu0 %v459
    %v495 = vpop.f32.mrb[0].mxu0
    %v496 = vadd.f32 0.0, %v495
    %v497 = vpop.f32.mrb[0].mxu0
    %v498 = vpop.f32.mrb[0].mxu0
    %v499 = vpop.f32.mrb[0].mxu0
    %500 = vdwg.mxu0
    %v501 = vmul.f32 %v496, %v58
    %v502 = vsel %vm334, %v501, 0.0
    %v503 = vrot.slane %v502, 4
    %v504 = vadd.f32 %v502, %v503
    %v505 = vrot.slane %v504, 2
    %v506 = vadd.f32 %v504, %v505
    %v507 = vrot.slane %v506, 1
    %v508 = vadd.f32 %v506, %v507
    %v509 = vmul.f32 %v508, 0.5
    %v510 = vsub.f32 %v496, %v509
    %v511 = vmul.f32 %v510, %v58
    %v512 = vmul.f32 %v511, %v511
    %v513 = vsel %vm334, %v512, 0.0
    %v514 = vrot.slane %v513, 4
    %v515 = vadd.f32 %v513, %v514
    %v516 = vrot.slane %v515, 2
    %v517 = vadd.f32 %v515, %v516
    %v518 = vrot.slane %v517, 1
    %v519 = vadd.f32 %v517, %v518
    %v520 = vmul.f32 %v519, 0.5
    %v521 = vadd.f32 %v520, 1e-05
    %v522 = vrsqrt.pop %v521
    %v523 = vmul.f32 %v510, %v522
    %v524 = vlaneseq
    %v525 = vshrl.u32 %v524, 7
    %v526 = vsub.s32 3, %v525
    %v527 = vrot.slane %v59, %v526
    %v528 = vmul.f32 %v523, %v527
    %v529 = vlaneseq
    %v530 = vshrl.u32 %v529, 7
    %v531 = vsub.s32 4, %v530
    %v532 = vrot.slane %v59, %v531
    %v533 = vadd.f32 %v528, %v532
    %v534 = vmax.f32 %v533, 0.0
    %v535 = vpack.c.bf16 %v534, %v534
    %v536 = vlaneseq
    %v537 = vshrl.u32 %v536, 7
    %v538 = vsub.s32 5, %v537
    %v539 = vrot.slane %v59, %v538
    %v548 = vunpack.c.l.b16 %v442
    %v549 = vunpack.c.l.b16 %v443
    %v550 = vunpack.c.l.b16 %v444
    %v551 = vunpack.c.l.b16 %v445
    %v552 = vunpack.c.l.b16 %v446
    %v553 = vunpack.c.l.b16 %v447
    %v554 = vunpack.c.l.b16 %v448
    %v555 = vunpack.c.l.b16 %v449
    %v556 = vpack.c.b16 %v549, %v548
    %v557 = vpack.c.b16 %v551, %v550
    %v558 = vpack.c.b16 %v553, %v552
    %v559 = vpack.c.b16 %v555, %v554
    %v565 = vsel %vm334, %v535, 0
    %567 = vmatprep.subr.bf16.mxu0 0
    %568 = vmatpush1.bf16.msra.mxu0 %v556
    %569 = vmatprep.subr.bf16.mxu0 0
    %570 = vmatpush1.bf16.msra.mxu0 %v557
    %571 = vmatprep.subr.bf16.mxu0 0
    %572 = vmatpush1.bf16.msra.mxu0 %v558
    %573 = vmatprep.subr.bf16.mxu0 0
    %574 = vmatpush1.bf16.msra.mxu0 %v559
    %575 = vmatprep.subr.bf16.mxu0 0
    %576 = vmatpush1.bf16.msra.mxu0 0
    %577 = vmatprep.subr.bf16.mxu0 0
    %578 = vmatpush1.bf16.msra.mxu0 0
    %579 = vmatprep.subr.bf16.mxu0 0
    %580 = vmatpush1.bf16.msra.mxu0 0
    %581 = vmatprep.subr.bf16.mxu0 0
    %582 = vmatpush1.bf16.msra.mxu0 0
    %583 = vmatprep.subr.bf16.mxu0 0
    %584 = vmatpush1.bf16.msra.mxu0 0
    %585 = vmatprep.subr.bf16.mxu0 0
    %586 = vmatpush1.bf16.msra.mxu0 0
    %587 = vmatprep.subr.bf16.mxu0 0
    %588 = vmatpush1.bf16.msra.mxu0 0
    %589 = vmatprep.subr.bf16.mxu0 0
    %590 = vmatpush1.bf16.msra.mxu0 0
    %591 = vmatprep.subr.bf16.mxu0 0
    %592 = vmatpush1.bf16.msra.mxu0 0
    %593 = vmatprep.subr.bf16.mxu0 0
    %594 = vmatpush1.bf16.msra.mxu0 0
    %595 = vmatprep.subr.bf16.mxu0 0
    %596 = vmatpush1.bf16.msra.mxu0 0
    %597 = vmatprep.subr.bf16.mxu0 0
    %598 = vmatpush1.bf16.msra.mxu0 0
    %599 = vmatprep.mubr.bf16.mxu0 0
    %600 = vmatmul.mubr.bf16.gmra.mrb[0].mxu0 %v565
    %v601 = vpop.f32.mrb[0].mxu0
    %v602 = vadd.f32 %v539, %v601
    %v603 = vpop.f32.mrb[0].mxu0
    %v604 = vpop.f32.mrb[0].mxu0
    %v605 = vpop.f32.mrb[0].mxu0
    %606 = vdwg.mxu0
    %608 = vrot.lane.b32.xlu0 %v435, 32
    %v609 = vpop.permute.xlu0 %608
    %612 = vrot.lane.b32.xlu0 %v602, 48
    %v613 = vpop.permute.xlu0 %612
    %v615 = vsel %vm289, %v259, %v609
    %vm616 = vcmask 392192
    %v617 = vsel %vm616, %v615, %v613
    %v618 = vsel %vm334, %v617, 0.0
    %619 = vst [vmem:[#allocation7] sm:$0xff] %v618
    // Predicated region
    $region38: #{tpu_custom_call.1} parent=1 // pred_check
      _
    $region39: #{tpu_custom_call.1} parent=1 // pred_check_branch
      %621 = sbr.rel (0) target = $region41
    $region40: #{tpu_custom_call.1} parent=1 // pred_region
      %s623 = ssub.s32 128, 128
      %624 = vsyncadd [#allocation4], %s623
      %s626 = sshll.u32 [#allocation7], 4
      %s627 = int_to_ptr.vmem [resolvable:$true] %s626
      %629 = dma.vmem_to_hbm [thread:$0]  %s627, 128, %s7, [#allocation4]
    $region41: #{tpu_custom_call.1} parent=1 // pred_fallthru
      _
    // Predicated region
    $region42: #{tpu_custom_call.1} parent=1 // pred_check
      _
    $region43: #{tpu_custom_call.1} parent=1 // pred_check_branch
      %631 = sbr.rel (0) target = $region45
    $region44: #{tpu_custom_call.1} parent=1 // pred_region
      %632 = dma.done [#allocation4], 128
    $region45: #{tpu_custom_call.1} parent=1 // pred_fallthru
      _
    %633 = vsyncpa [#allocation3], 1
    %634 = vsyncpa [#allocation6], 1
    %635 = vsyncpa [#allocation4], 1

</llo_original>
